<compile_context>
chip_gen: v5e
topology: v5e:2x2
jax: 0.10.0
libtpu: 0.0.40
codegen_flags: <defaults>
</compile_context>

<pallas_src>
import functools

import jax
import jax.numpy as jnp
from jax.experimental import pallas as pl
from jax.experimental.pallas import tpu as pltpu

_LANES = 1024                      # lane-dense last dim (multiple of 128)
_TILE_BYTES = 4 * 1024 * 1024      # ~4 MiB/tile; 4 buffers (in+out x2) = 16 MiB
_VMEM_LIMIT_BYTES = 48 * 1024 * 1024


def _gaussian_kernel(x_ref, o_ref, *, neg_inv_two_a_sq):
    # Widen to f32 for the elementwise math; exp goes to the EUP.
    x = x_ref[...].astype(jnp.float32)
    o_ref[...] = jnp.exp((x * x) * neg_inv_two_a_sq).astype(o_ref.dtype)


def _gaussian_jnp(x, neg_inv_two_a_sq):
    xf = x.astype(jnp.float32)
    return jnp.exp((xf * xf) * neg_inv_two_a_sq).astype(x.dtype)


def gaussian(x: jax.Array, a: float) -> jax.Array:
    """Elementwise Gaussian activation via a Pallas TPU kernel.

    Accepts any shape (NCHW expected from the PyTorch module); returns the
    same shape/dtype.
    """
    orig_shape = x.shape
    orig_dtype = x.dtype
    n = x.size
    if n == 0:
        return x

    neg_inv_two_a_sq = -1.0 / (2.0 * float(a) * float(a))

    flat = x.reshape(-1)            # contiguous bitcast, free
    rows = n // _LANES
    n_main = rows * _LANES

    if rows == 0:
        # Tiny input (< 1024 elements): a kernel launch is pure overhead.
        return _gaussian_jnp(flat, neg_inv_two_a_sq).reshape(orig_shape)

    itemsize = jnp.dtype(orig_dtype).itemsize
    # Sublane packing granularity: f32 -> 8, bf16/f16 -> 16, int8/fp8 -> 32.
    sub = max(8, (8 * 4) // itemsize)
    # Byte-constant row cap (multiple of `sub`).
    cap = max(sub, (_TILE_BYTES // (_LANES * itemsize)) // sub * sub)

    if rows > cap:
        block_rows = cap
    elif rows >= 2 * sub:
        # Guarantee >= 2 grid steps so v7x can use both TensorCores and the
        # input/output DMA pipeline actually overlaps.
        half = pl.cdiv(rows, 2)
        block_rows = ((half + sub - 1) // sub) * sub
    else:
        block_rows = rows           # full extent, single tile (satisfies (8,128) rule)

    grid = (pl.cdiv(rows, block_rows),)

    kernel = functools.partial(_gaussian_kernel,
                               neg_inv_two_a_sq=neg_inv_two_a_sq)

    main_flat = flat if n_main == n else flat[:n_main]
    x2d = main_flat.reshape(rows, _LANES)

    out2d = pl.pallas_call(
        kernel,
        out_shape=jax.ShapeDtypeStruct((rows, _LANES), orig_dtype),
        grid_spec=pltpu.PrefetchScalarGridSpec(
            num_scalar_prefetch=0,
            grid=grid,
            in_specs=[pl.BlockSpec((block_rows, _LANES), lambda i: (i, 0))],
            out_specs=pl.BlockSpec((block_rows, _LANES), lambda i: (i, 0)),
        ),
        compiler_params=pltpu.CompilerParams(
            dimension_semantics=("parallel",),
            vmem_limit_bytes=_VMEM_LIMIT_BYTES,
        ),
    )(x2d)

    out_flat = out2d.reshape(-1)
    if n_main != n:
        # Ragged tail (< 1024 elements): plain jnp, negligible cost.
        tail_out = _gaussian_jnp(flat[n_main:], neg_inv_two_a_sq)
        out_flat = jnp.concatenate([out_flat, tail_out])
    return out_flat.reshape(orig_shape)


def gaussian_ref(x: jax.Array, a: float) -> jax.Array:
    return jnp.exp(-(x * x) / (2.0 * a * a))


class Gaussian:
    """JAX mirror of the PyTorch Gaussian activation module."""

    def __init__(self, a: int):
        assert a != 0, "Gaussian activation requires a != 0"
        self.a = a

    def __call__(self, x: jax.Array) -> jax.Array:
        return gaussian(x, self.a)


if __name__ == "__main__":
    key = jax.random.PRNGKey(0)
    # NCHW input, small shapes (2*4*16*16 = 2048 elems -> (2, 1024) slab)
    x = jax.random.normal(key, (2, 4, 16, 16), dtype=jnp.float32)

    a = 2  # module hyper-parameter, deterministic
    module = Gaussian(a)

    out = jax.block_until_ready(module(x))

    ref = gaussian_ref(x, a)
    assert out.shape == x.shape and out.dtype == x.dtype
    assert jnp.allclose(out, ref, atol=1e-6, rtol=1e-6)

    # Larger, non-multiple-of-1024, bf16 case: exercises the >=2-tile grid,
    # partial (masked) last row block, and the jnp tail path (no pad/slice).
    x_big = jax.random.normal(jax.random.PRNGKey(1), (3, 8, 37, 53),
                              dtype=jnp.bfloat16)
    out_big = jax.block_until_ready(gaussian(x_big, a))
    ref_big = gaussian_ref(x_big.astype(jnp.float32), a).astype(jnp.bfloat16)
    assert out_big.shape == x_big.shape and out_big.dtype == x_big.dtype
    assert jnp.allclose(out_big.astype(jnp.float32),
                        ref_big.astype(jnp.float32), atol=2e-2, rtol=2e-2)

    print("KERNEL_OK")
</pallas_src>

<mosaic_0001>
module attributes {stable_mosaic.version = 11 : i64} {
  func.func @_gaussian_kernel(%arg0: i32, %arg1: memref<2x1024xf32, #tpu.memory_space<vmem>>, %arg2: memref<2x1024xf32, #tpu.memory_space<vmem>>) attributes {dimension_semantics = [#tpu.dimension_semantics<parallel>], iteration_bounds = array<i64: 1>, scalar_prefetch = 0 : i64, scratch_operands = 0 : i64, tpu.core_type = #tpu.core_type<tc>, window_params = [{transform_indices = @transform_0, window_bounds = array<i64: 2, 1024>}, {transform_indices = @transform_1, window_bounds = array<i64: 2, 1024>}]} {
    %c0 = arith.constant 0 : index
    %c0_0 = arith.constant 0 : index
    %0 = vector.load %arg1[%c0, %c0_0] : memref<2x1024xf32, #tpu.memory_space<vmem>>, vector<2x1024xf32>
    %1 = arith.mulf %0, %0 : vector<2x1024xf32>
    %cst = arith.constant -1.250000e-01 : f32
    %2 = vector.broadcast %cst : f32 to vector<2x1024xf32>
    %3 = arith.mulf %1, %2 : vector<2x1024xf32>
    %4 = math.exp %3 : vector<2x1024xf32>
    %c0_1 = arith.constant 0 : index
    %c0_2 = arith.constant 0 : index
    %5 = vector.load %arg2[%c0_1, %c0_2] : memref<2x1024xf32, #tpu.memory_space<vmem>>, vector<2x1024xf32>
    tpu.vector_store %arg2[%c0_1, %c0_2], %4 {strides = array<i32>} : memref<2x1024xf32, #tpu.memory_space<vmem>>, vector<2x1024xf32>,
    return
  }
  func.func @transform_0(%arg0: i32) -> (i32, i32) {
    %c0_i32 = arith.constant 0 : i32
    %c0_i32_0 = arith.constant 0 : i32
    return %arg0, %c0_i32 : i32, i32
  }
  func.func @transform_1(%arg0: i32) -> (i32, i32) {
    %c0_i32 = arith.constant 0 : i32
    %c0_i32_0 = arith.constant 0 : i32
    return %arg0, %c0_i32 : i32, i32
  }
}

</mosaic_0001>

<llo_original>
// kernel: tpu_custom_call.1
$region0: #{tpu_custom_call.1}
  #allocation0 [shape = 'u32[]', space=smem, size = 0x4, offset = 0x4, fixed_abs, tag = 'smem constant byte address 0x4 - core index']
  #allocation1 [shape = 'u32[72,128]{1,0:T(1,128)}', space=vmem, size = 0x9000, scoped, tag = 'internal scratch']
  %s0 = inlined_call_operand.hbm [shape: f32[2,1024], index: 0, kind: input, shape index: {}]
  %s1 = inlined_call_operand.hbm [shape: f32[2,1024], index: 1, kind: output, shape index: {}]
  %s2 = sld [smem:[#allocation0]]
  $region18: #{tpu_custom_call.1} parent=0
    _
  %s4 = ssub.s32 1, %s2
  %s5 = scalar_select 0, %s4, %s2
  $region1: #{tpu_custom_call.1} parent=0
    #allocation2 [shape = 'u8[8192]{0}', space=vmem, size = 0x2000, scoped, tag = 'input window, operand 0, single buffered']
    #allocation3 [shape = 's32[1]{0}', space=sflag, size = 0x4, scoped, tag = 'scoped memory for tpu_custom_call.1']
    #allocation4 [shape = 's32[1]{0}', space=sflag, size = 0x4, scoped, tag = 'scoped memory for tpu_custom_call.1']
    #allocation5 [shape = 'u8[8192]{0}', space=vmem, size = 0x2000, scoped, tag = 'output window, operand 0, single buffered']
    %6 = vsyncpa [#allocation3], 0
    %7 = vsyncpa [#allocation4], 0
    // Predicated region
    $region2: #{tpu_custom_call.1} parent=1 // pred_check
      _
    $region3: #{tpu_custom_call.1} parent=1 // pred_check_branch
      %9 = sbr.rel (0) target = $region5
    $region4: #{tpu_custom_call.1} parent=1 // pred_region
      %11 = vsyncadd [#allocation3], 0
      %s13 = sshll.u32 %s0, 4
      %s14 = int_to_ptr.hbm [resolvable:$true] %s13
      %s15 = sshll.u32 [#allocation2], 4
      %s16 = int_to_ptr.vmem [resolvable:$true] %s15
      %18 = dma.hbm_to_vmem [thread:$0]  %s14, 256, %s16, [#allocation3]
    $region5: #{tpu_custom_call.1} parent=1 // pred_fallthru
      _
    // Predicated region
    $region6: #{tpu_custom_call.1} parent=1 // pred_check
      _
    $region7: #{tpu_custom_call.1} parent=1 // pred_check_branch
      %20 = sbr.rel (0) target = $region9
    $region8: #{tpu_custom_call.1} parent=1 // pred_region
      %22 = dma.done [#allocation3], 256
    $region9: #{tpu_custom_call.1} parent=1 // pred_fallthru
      _
    %v23 = vld [vmem:[#allocation2] sm:$0xff]
    %v24 = vld [vmem:[#allocation2 + $0x8] sm:$0xff]
    %v25 = vmul.f32 %v23, %v23
    %v26 = vmul.f32 %v24, %v24
    %v27 = vmul.f32 %v25, -0.125
    %v28 = vmul.f32 %v26, -0.125
    %v29 = vmul.f32 %v27, 1.442695
    %v30 = vpow.pop %v29
    %v31 = vmul.f32 %v28, 1.442695
    %v32 = vpow.pop %v31
    %33 = vst [vmem:[#allocation5] sm:$0xff] %v30
    %34 = vst [vmem:[#allocation5 + $0x8] sm:$0xff] %v32
    // Predicated region
    $region10: #{tpu_custom_call.1} parent=1 // pred_check
      _
    $region11: #{tpu_custom_call.1} parent=1 // pred_check_branch
      %36 = sbr.rel (0) target = $region13
    $region12: #{tpu_custom_call.1} parent=1 // pred_region
      %38 = vsyncadd [#allocation4], 0
      %s40 = sshll.u32 [#allocation5], 4
      %s41 = int_to_ptr.vmem [resolvable:$true] %s40
      %s42 = sshll.u32 %s1, 4
      %s43 = int_to_ptr.hbm [resolvable:$true] %s42
      %45 = dma.vmem_to_hbm [thread:$0]  %s41, 256, %s43, [#allocation4]
    $region13: #{tpu_custom_call.1} parent=1 // pred_fallthru
      _
    // Predicated region
    $region14: #{tpu_custom_call.1} parent=1 // pred_check
      _
    $region15: #{tpu_custom_call.1} parent=1 // pred_check_branch
      %47 = sbr.rel (0) target = $region17
    $region16: #{tpu_custom_call.1} parent=1 // pred_region
      %49 = dma.done [#allocation4], 256
    $region17: #{tpu_custom_call.1} parent=1 // pred_fallthru
      _
    %50 = vsyncpa [#allocation3], 1
    %51 = vsyncpa [#allocation4], 1

</llo_original>
